<compile_context>
chip_gen: v7x
topology: tpu7x:2x2x1
jax: 0.10.0
libtpu: 0.0.40
codegen_flags: <defaults>
</compile_context>

<pallas_src>
import functools
import math

import jax
import jax.numpy as jnp
from jax import lax
from jax.experimental import pallas as pl
from jax.experimental.pallas import tpu as pltpu


# ---------------------------------------------------------------------------
# Generation-aware defaults.
# ---------------------------------------------------------------------------
def _tpu_defaults():
    """(vmem_limit_bytes, bf16_exp) per TPU generation; conservative fallback."""
    try:
        kind = jax.devices()[0].device_kind.lower()
    except Exception:
        kind = ""
    if "v7" in kind:                       # 64 MiB physical VMEM per TensorCore
        return 44 * 1024 * 1024, True
    if "v6" in kind:                       # 128 MiB physical VMEM, bf16 EUP
        return 96 * 1024 * 1024, True
    if "v5" in kind:                       # 128 MiB physical VMEM, no bf16 EUP/VPU
        return 80 * 1024 * 1024, False
    return 32 * 1024 * 1024, False         # unknown / non-TPU backend: stay safe


def _pick_tile(n, candidates, fits=lambda c: True):
    """Largest candidate that divides n and fits the VMEM budget (best effort)."""
    for c in sorted(set(candidates), reverse=True):
        if c <= n and n % c == 0 and fits(c):
            return c
    for c in sorted(set(candidates)):      # fallback: smallest divisor, ignore budget
        if c <= n and n % c == 0:
            return c
    return n                               # nothing divides: single full-extent block


# ---------------------------------------------------------------------------
# Shared softmax-attention core (runs on VMEM-resident tiles inside a kernel).
# ---------------------------------------------------------------------------
def _softmax_attention(q, k, v, bias, out_ref, scores_ref, *, bf16_exp):
    # q: (TQ, A) bf16 (already scaled by 1/sqrt(dk)); k, v: (L, A) bf16;
    # bias: (1|TQ, L) bf16 additive mask bias.
    # Q @ K^T as a dot_general contraction on the feature axis (no XLU transpose of K).
    s = lax.dot_general(q, k, (((1,), (1,)), ((), ())),
                        preferred_element_type=jnp.float32)          # (TQ, L) f32
    s = s + bias.astype(jnp.float32)
    s = s - jnp.max(s, axis=-1, keepdims=True)                       # stable softmax
    if bf16_exp:                                                     # v6e / v7x: bf16 EUP
        e = jnp.exp(s.astype(jnp.bfloat16))
        denom = jnp.sum(e, axis=-1, keepdims=True, dtype=jnp.float32)
    else:                                                            # v5e: keep f32 path
        e = jnp.exp(s)
        denom = jnp.sum(e, axis=-1, keepdims=True)
    p = e.astype(jnp.float32) * (1.0 / denom)                        # exact row reciprocal

    # (dropout is identity in eval mode)

    out = jnp.dot(p.astype(v.dtype), v, preferred_element_type=jnp.float32)   # (TQ, A)
    scores_ref[0] = p.astype(scores_ref.dtype)
    out_ref[0] = out.astype(out_ref.dtype)


# ---------------------------------------------------------------------------
# Path A: fully fused kernel (projection + attention), grid over batch only.
# ---------------------------------------------------------------------------
def _fused_self_attention_kernel(x_ref, w_ref, bias_ref, out_ref, scores_ref,
                                 *, A, bf16_exp):
    # x_ref: (1, L, D) bf16;  w_ref: (D, 3A) bf16 resident;  bias_ref: (1, 1|L, L) bf16
    x = x_ref[0]
    kqv = jnp.dot(x, w_ref[...],
                  preferred_element_type=jnp.float32).astype(jnp.bfloat16)    # (L, 3A)
    k, q, v = kqv[:, :A], kqv[:, A:2 * A], kqv[:, 2 * A:]
    _softmax_attention(q, k, v, bias_ref[0], out_ref, scores_ref, bf16_exp=bf16_exp)


# ---------------------------------------------------------------------------
# Path B stage 1: fused kqv projection, tiled over B*L rows, single wide matmul.
# ---------------------------------------------------------------------------
def _kqv_proj_kernel(x_ref, w_ref, kqv_ref):
    # x_ref: (TM, D) bf16; w_ref: (D, 3A) bf16 resident; kqv_ref: (TM, 3A) bf16
    kqv_ref[...] = jnp.dot(x_ref[...], w_ref[...],
                           preferred_element_type=jnp.float32).astype(kqv_ref.dtype)


# ---------------------------------------------------------------------------
# Path B stage 2: attention over a (batch, query-tile) grid; kqv slab resident per b.
# ---------------------------------------------------------------------------
def _attention_kernel(qtile_ref, kqv_ref, bias_ref, out_ref, scores_ref, *, A, bf16_exp):
    kv = kqv_ref[0]                      # (L, 3A) bf16, resident across query tiles
    k, v = kv[:, :A], kv[:, 2 * A:]
    q = qtile_ref[0][:, A:2 * A]         # (TQ, A) bf16 (scale folded into weight)
    _softmax_attention(q, k, v, bias_ref[0], out_ref, scores_ref, bf16_exp=bf16_exp)


# ---------------------------------------------------------------------------
# Wrapper.
# ---------------------------------------------------------------------------
def self_attention(x, w_kqv_t, attention_mask=None, *, attention_size, dk,
                   scores_dtype=jnp.bfloat16, use_fused=None):
    """Eval-mode forward of slp SelfAttention.

    x:              [B, L, D] float32
    w_kqv_t:        [D, 3*attention_size] fused kqv Linear weight (torch weight.T)
    attention_mask: optional [B, L], [B, 1, L] or [B, L, L] zero/one mask
    scores_dtype:   dtype of the returned attention scores (bf16 halves HBM writeback;
                    pass jnp.float32 for exact dtype parity with torch)
    use_fused:      None = auto (VMEM-based); True/False to force a path
    returns:        (out [B, L, A], scores [B, L, L])
    """
    B, L, D = x.shape
    A = attention_size
    assert w_kqv_t.shape == (D, 3 * A)

    vmem_limit, bf16_exp = _tpu_defaults()
    budget = int(0.9 * vmem_limit)
    sc_bytes = jnp.dtype(scores_dtype).itemsize
    out_bytes = x.dtype.itemsize

    # ---- fused weight [D, 3A] (columns k | q | v); fold 1/sqrt(dk) into q columns.
    col_scale = jnp.concatenate([
        jnp.ones((A,), jnp.float32),
        jnp.full((A,), 1.0 / math.sqrt(dk), jnp.float32),
        jnp.ones((A,), jnp.float32)])
    w = (w_kqv_t.astype(jnp.float32) * col_scale[None, :]).astype(jnp.bfloat16)

    # ---- mask -> additive bias, precomputed once, stored bf16 (halves bias DMA).
    if attention_mask is None:
        bias = jnp.zeros((B, 1, L), jnp.bfloat16)
    else:
        m = attention_mask
        if m.ndim == 2:                  # [B, L] -> [B, 1, L]
            m = m[:, None, :]
        if m.shape not in ((B, 1, L), (B, L, L)):
            raise ValueError(
                f"attention_mask must be [B, L], [B, 1, L] or [B, L, L]; got {m.shape}")
        bias = ((1.0 - m.astype(jnp.float32)) * -100000.0).astype(jnp.bfloat16)
    Mq = bias.shape[1]

    xb = x.astype(jnp.bfloat16)

    def compiler_params(sem):
        return pltpu.CompilerParams(dimension_semantics=sem,
                                    vmem_limit_bytes=vmem_limit)

    # ---- path selection: fully fused single kernel when the per-batch footprint fits.
    def fused_bytes():
        return (2 * L * D * 2                         # x block (double-buffered)
                + D * 3 * A * 2                       # resident weight (Buffered(1))
                + 2 * L * A * out_bytes               # out block
                + 2 * L * L * sc_bytes                # scores block
                + 2 * (L if Mq != 1 else 1) * L * 2   # bias block
                + L * 3 * A * 6                       # kqv temporaries (f32 + bf16)
                + 4 * L * L * 4)                      # softmax temporaries (f32 bound)

    if use_fused is None:
        use_fused = fused_bytes() <= budget // 2

    if use_fused:
        kernel = functools.partial(_fused_self_attention_kernel, A=A, bf16_exp=bf16_exp)
        out, scores = pl.pallas_call(
            kernel,
            out_shape=(jax.ShapeDtypeStruct((B, L, A), x.dtype),
                       jax.ShapeDtypeStruct((B, L, L), scores_dtype)),
            grid_spec=pltpu.PrefetchScalarGridSpec(
                num_scalar_prefetch=0,
                grid=(B,),
                in_specs=[
                    pl.BlockSpec((1, L, D), lambda b: (b, 0, 0)),
                    pl.BlockSpec((D, 3 * A), lambda b: (0, 0),
                                 pipeline_mode=pl.Buffered(1)),     # single resident copy
                    pl.BlockSpec((1, Mq, L), lambda b: (b, 0, 0)),
                ],
                out_specs=[
                    pl.BlockSpec((1, L, A), lambda b: (b, 0, 0)),
                    pl.BlockSpec((1, L, L), lambda b: (b, 0, 0)),
                ],
            ),
            compiler_params=compiler_params(("parallel",)),
        )(xb, w, bias)
        return out, scores

    # =======================================================================
    # Path B, stage 1: one wide kqv matmul over row tiles of the flattened input,
    # lane-dense (TM, 3A) output stores.
    # =======================================================================
    BL = B * L
    xf = xb.reshape(BL, D)

    def s1_fits(tm):
        return (2 * tm * D * 2 + D * 3 * A * 2 + 2 * tm * 3 * A * 2
                + tm * 3 * A * 4) <= budget

    TM = _pick_tile(BL, (2048, 1024, 512, 256, 128, 64, 32, 16, 8), s1_fits)
    # TODO(synk): if the resident weight alone overflows the budget (huge D*A, mainly
    # v7x), add a K-split grid axis with an f32 VMEM accumulator instead.

    kqv = pl.pallas_call(
        _kqv_proj_kernel,
        out_shape=jax.ShapeDtypeStruct((BL, 3 * A), jnp.bfloat16),
        grid_spec=pltpu.PrefetchScalarGridSpec(
            num_scalar_prefetch=0,
            grid=(BL // TM,),
            in_specs=[
                pl.BlockSpec((TM, D), lambda i: (i, 0)),
                pl.BlockSpec((D, 3 * A), lambda i: (0, 0),
                             pipeline_mode=pl.Buffered(1)),          # resident weight
            ],
            out_specs=pl.BlockSpec((TM, 3 * A), lambda i: (i, 0)),
        ),
        compiler_params=compiler_params(("parallel",)),
    )(xf, w)
    kqv = kqv.reshape(B, L, 3 * A)

    # =======================================================================
    # Path B, stage 2: attention over (batch, query-tile); per-batch kqv slab resident.
    # =======================================================================
    def s2_fits(tq):
        bias_rows = tq if Mq != 1 else 1
        return (2 * L * 3 * A * 2                      # resident kqv[b]
                + 2 * tq * 3 * A * 2                   # q row tile
                + 2 * tq * A * out_bytes               # out tile
                + 2 * tq * L * sc_bytes                # scores tile
                + 2 * bias_rows * L * 2                # bias tile
                + 4 * tq * L * 4) <= budget            # softmax temporaries (f32 bound)

    TQ = _pick_tile(L, (1024, 512, 256, 128, 64, 32, 16, 8), s2_fits)
    NQ = L // TQ

    if Mq == 1:
        bias_block, bias_idx = (1, 1, L), (lambda b, qi: (b, 0, 0))
    else:
        bias_block, bias_idx = (1, TQ, L), (lambda b, qi: (b, qi, 0))

    kernel = functools.partial(_attention_kernel, A=A, bf16_exp=bf16_exp)
    out, scores = pl.pallas_call(
        kernel,
        out_shape=(jax.ShapeDtypeStruct((B, L, A), x.dtype),
                   jax.ShapeDtypeStruct((B, L, L), scores_dtype)),
        grid_spec=pltpu.PrefetchScalarGridSpec(
            num_scalar_prefetch=0,
            grid=(B, NQ),
            in_specs=[
                pl.BlockSpec((1, TQ, 3 * A), lambda b, qi: (b, qi, 0)),   # q row tile
                pl.BlockSpec((1, L, 3 * A), lambda b, qi: (b, 0, 0)),     # resident kqv[b]
                pl.BlockSpec(bias_block, bias_idx),
            ],
            out_specs=[
                pl.BlockSpec((1, TQ, A), lambda b, qi: (b, qi, 0)),
                pl.BlockSpec((1, TQ, L), lambda b, qi: (b, qi, 0)),
            ],
        ),
        compiler_params=compiler_params(("parallel", "parallel")),
    )(kqv, kqv, bias)
    return out, scores


def make_params(key, input_size, attention_size):
    """Xavier-normal init of the fused kqv Linear weight (bias=False), matching reset_parameters."""
    fan_in, fan_out = input_size, 3 * attention_size
    std = math.sqrt(2.0 / (fan_in + fan_out))
    # torch Linear weight is [out, in]; we store it transposed as [in, out] so kernels do x @ W.
    return std * jax.random.normal(key, (input_size, 3 * attention_size), dtype=jnp.float32)


if __name__ == "__main__":
    key = jax.random.PRNGKey(0)
    k_x, k_w = jax.random.split(key)

    B, L = 2, 8
    attention_size = 32          # hidden features
    input_size = attention_size  # D == A (module default when input_size=None)
    dk = input_size
    A = attention_size

    x = jax.random.normal(k_x, (B, L, input_size), dtype=jnp.float32)
    w_kqv_t = make_params(k_w, input_size, attention_size)

    # simple pad mask: all valid except last two positions of batch element 1
    attention_mask = jnp.ones((B, L), dtype=jnp.float32).at[1, -2:].set(0.0)

    # pure-f32 JAX reference (eval mode, no dropout); tolerances cover bf16 MXU inputs.
    kqv_r = x @ w_kqv_t
    k_r, q_r, v_r = kqv_r[..., :A], kqv_r[..., A:2 * A], kqv_r[..., 2 * A:]
    s_r = jnp.einsum("bqa,bka->bqk", q_r, k_r) / math.sqrt(dk)
    s_r = s_r + (1.0 - attention_mask[:, None, :]) * -100000.0
    p_r = jax.nn.softmax(s_r, axis=-1)
    o_r = jnp.einsum("bqk,bka->bqa", p_r, v_r)

    # exercise both the fused single-kernel path and the two-kernel path
    for fused in (True, False):
        out, scores = self_attention(
            x, w_kqv_t, attention_mask, attention_size=A, dk=dk, use_fused=fused)
        jax.block_until_ready((out, scores))
        assert out.shape == (B, L, A) and scores.shape == (B, L, L)
        assert float(jnp.max(jnp.abs(scores.astype(jnp.float32) - p_r))) < 5e-2, \
            f"scores mismatch (fused={fused})"
        assert float(jnp.max(jnp.abs(out.astype(jnp.float32) - o_r))) < 1e-1, \
            f"output mismatch (fused={fused})"

    print("KERNEL_OK")
</pallas_src>

<mosaic_0001>
module attributes {stable_mosaic.version = 11 : i64} {
  func.func @_fused_self_attention_kernel(%arg0: i32, %arg1: memref<1x8x32xbf16, #tpu.memory_space<vmem>>, %arg2: memref<32x96xbf16, #tpu.memory_space<vmem>>, %arg3: memref<1x1x8xbf16, #tpu.memory_space<vmem>>, %arg4: memref<1x8x32xf32, #tpu.memory_space<vmem>>, %arg5: memref<1x8x8xbf16, #tpu.memory_space<vmem>>) attributes {dimension_semantics = [#tpu.dimension_semantics<parallel>], iteration_bounds = array<i64: 2>, scalar_prefetch = 0 : i64, scratch_operands = 0 : i64, tpu.core_type = #tpu.core_type<tc>, window_params = [{transform_indices = @transform_0, window_bounds = array<i64: 1, 8, 32>}, {pipeline_mode = #tpu.pipeline_mode<synchronous>, transform_indices = @transform_1, window_bounds = array<i64: 32, 96>}, {transform_indices = @transform_2, window_bounds = array<i64: 1, 1, 8>}, {transform_indices = @transform_3, window_bounds = array<i64: 1, 8, 32>}, {transform_indices = @transform_4, window_bounds = array<i64: 1, 8, 8>}]} {
    %c0 = arith.constant 0 : index
    %c0_0 = arith.constant 0 : index
    %c0_1 = arith.constant 0 : index
    %0 = vector.load %arg1[%c0, %c0_0, %c0_1] : memref<1x8x32xbf16, #tpu.memory_space<vmem>>, vector<1x8x32xbf16>
    %1 = vector.shape_cast %0 : vector<1x8x32xbf16> to vector<8x32xbf16>
    %c0_2 = arith.constant 0 : index
    %c0_3 = arith.constant 0 : index
    %2 = vector.load %arg2[%c0_2, %c0_3] : memref<32x96xbf16, #tpu.memory_space<vmem>>, vector<32x96xbf16>
    %cst = arith.constant dense<0.000000e+00> : vector<8x96xf32>
    %3 = tpu.matmul %1, %2, %cst {dimension_numbers = #tpu.dot_dimension_numbers<[1], [0], [0], [1], [0, 0, 1, 1], [], []>} : vector<8x32xbf16>, vector<32x96xbf16>, vector<8x96xf32> -> vector<8x96xf32>
    %4 = arith.truncf %3 : vector<8x96xf32> to vector<8x96xbf16>
    %5 = vector.extract_strided_slice %4 {offsets = [0, 0], sizes = [8, 32], strides = [1, 1]} : vector<8x96xbf16> to vector<8x32xbf16>
    %6 = vector.extract_strided_slice %4 {offsets = [0, 32], sizes = [8, 32], strides = [1, 1]} : vector<8x96xbf16> to vector<8x32xbf16>
    %7 = vector.extract_strided_slice %4 {offsets = [0, 64], sizes = [8, 32], strides = [1, 1]} : vector<8x96xbf16> to vector<8x32xbf16>
    %c0_4 = arith.constant 0 : index
    %c0_5 = arith.constant 0 : index
    %c0_6 = arith.constant 0 : index
    %8 = vector.load %arg3[%c0_4, %c0_5, %c0_6] : memref<1x1x8xbf16, #tpu.memory_space<vmem>>, vector<1x1x8xbf16>
    %9 = vector.shape_cast %8 : vector<1x1x8xbf16> to vector<1x8xbf16>
    %cst_7 = arith.constant dense<0.000000e+00> : vector<8x8xf32>
    %10 = tpu.matmul %6, %5, %cst_7 {dimension_numbers = #tpu.dot_dimension_numbers<[1], [1], [0], [0], [0, 0, 1, 0], [], []>} : vector<8x32xbf16>, vector<8x32xbf16>, vector<8x8xf32> -> vector<8x8xf32>
    %11 = arith.extf %9 : vector<1x8xbf16> to vector<1x8xf32>
    %12 = vector.broadcast %11 : vector<1x8xf32> to vector<8x8xf32>
    %13 = arith.addf %10, %12 : vector<8x8xf32>
    %cst_8 = arith.constant dense<0xFF800000> : vector<8xf32>
    %14 = vector.multi_reduction <maximumf>, %13, %cst_8 [1] : vector<8x8xf32> to vector<8xf32>
    %15 = vector.shape_cast %14 : vector<8xf32> to vector<8x1xf32>
    %16 = vector.broadcast %15 : vector<8x1xf32> to vector<8x8xf32>
    %17 = arith.subf %13, %16 : vector<8x8xf32>
    %18 = math.exp %17 : vector<8x8xf32>
    %cst_9 = arith.constant dense<0.000000e+00> : vector<8xf32>
    %19 = vector.multi_reduction <add>, %18, %cst_9 [1] : vector<8x8xf32> to vector<8xf32>
    %20 = vector.shape_cast %19 : vector<8xf32> to vector<8x1xf32>
    %cst_10 = arith.constant 1.000000e+00 : f32
    %21 = vector.broadcast %cst_10 : f32 to vector<8x1xf32>
    %22 = arith.divf %21, %20 : vector<8x1xf32>
    %23 = vector.broadcast %22 : vector<8x1xf32> to vector<8x8xf32>
    %24 = arith.mulf %18, %23 : vector<8x8xf32>
    %25 = arith.truncf %24 : vector<8x8xf32> to vector<8x8xbf16>
    %cst_11 = arith.constant dense<0.000000e+00> : vector<8x32xf32>
    %26 = tpu.matmul %25, %7, %cst_11 {dimension_numbers = #tpu.dot_dimension_numbers<[1], [0], [0], [1], [0, 0, 1, 1], [], []>} : vector<8x8xbf16>, vector<8x32xbf16>, vector<8x32xf32> -> vector<8x32xf32>
    %27 = arith.truncf %24 : vector<8x8xf32> to vector<8x8xbf16>
    %c0_12 = arith.constant 0 : index
    %c0_13 = arith.constant 0 : index
    %c0_14 = arith.constant 0 : index
    %28 = vector.load %arg5[%c0_12, %c0_13, %c0_14] : memref<1x8x8xbf16, #tpu.memory_space<vmem>>, vector<1x8x8xbf16>
    %29 = vector.shape_cast %28 : vector<1x8x8xbf16> to vector<8x8xbf16>
    %30 = vector.shape_cast %27 : vector<8x8xbf16> to vector<1x8x8xbf16>
    tpu.vector_store %arg5[%c0_12, %c0_13, %c0_14], %30 {strides = array<i32>} : memref<1x8x8xbf16, #tpu.memory_space<vmem>>, vector<1x8x8xbf16>,
    %c0_15 = arith.constant 0 : index
    %c0_16 = arith.constant 0 : index
    %c0_17 = arith.constant 0 : index
    %31 = vector.load %arg4[%c0_15, %c0_16, %c0_17] : memref<1x8x32xf32, #tpu.memory_space<vmem>>, vector<1x8x32xf32>
    %32 = vector.shape_cast %31 : vector<1x8x32xf32> to vector<8x32xf32>
    %33 = vector.shape_cast %26 : vector<8x32xf32> to vector<1x8x32xf32>
    tpu.vector_store %arg4[%c0_15, %c0_16, %c0_17], %33 {strides = array<i32>} : memref<1x8x32xf32, #tpu.memory_space<vmem>>, vector<1x8x32xf32>,
    return
  }
  func.func @transform_0(%arg0: i32) -> (i32, i32, i32) {
    %c0_i32 = arith.constant 0 : i32
    %c0_i32_0 = arith.constant 0 : i32
    %c0_i32_1 = arith.constant 0 : i32
    return %arg0, %c0_i32, %c0_i32_0 : i32, i32, i32
  }
  func.func @transform_1(%arg0: i32) -> (i32, i32) {
    %c0_i32 = arith.constant 0 : i32
    %c0_i32_0 = arith.constant 0 : i32
    %c0_i32_1 = arith.constant 0 : i32
    return %c0_i32, %c0_i32_0 : i32, i32
  }
  func.func @transform_2(%arg0: i32) -> (i32, i32, i32) {
    %c0_i32 = arith.constant 0 : i32
    %c0_i32_0 = arith.constant 0 : i32
    %c0_i32_1 = arith.constant 0 : i32
    return %arg0, %c0_i32, %c0_i32_0 : i32, i32, i32
  }
  func.func @transform_3(%arg0: i32) -> (i32, i32, i32) {
    %c0_i32 = arith.constant 0 : i32
    %c0_i32_0 = arith.constant 0 : i32
    %c0_i32_1 = arith.constant 0 : i32
    return %arg0, %c0_i32, %c0_i32_0 : i32, i32, i32
  }
  func.func @transform_4(%arg0: i32) -> (i32, i32, i32) {
    %c0_i32 = arith.constant 0 : i32
    %c0_i32_0 = arith.constant 0 : i32
    %c0_i32_1 = arith.constant 0 : i32
    return %arg0, %c0_i32, %c0_i32_0 : i32, i32, i32
  }
}

</mosaic_0001>

<llo_original>
// kernel: tpu_custom_call.1
$region0: #{tpu_custom_call.1}
  #allocation0 [shape = 'u32[]', space=smem, size = 0x4, offset = 0x4, fixed_abs, tag = 'smem constant byte address 0x4 - core index']
  #allocation1 [shape = 'u32[144,128]{1,0:T(1,128)}', space=vmem, size = 0x12000, scoped, tag = 'internal scratch']
  %s0 = inlined_call_operand.hbm [shape: bf16[2,8,32], index: 0, kind: input, shape index: {}]
  %s1 = inlined_call_operand.hbm [shape: bf16[32,96], index: 1, kind: input, shape index: {}]
  %s2 = inlined_call_operand.vmem [shape: bf16[2,1,8], index: 2, kind: input, shape index: {}]
  %s3 = inlined_call_operand.hbm [shape: f32[2,8,32], index: 3, kind: output, shape index: {0}]
  %s4 = inlined_call_operand.hbm [shape: bf16[2,8,8], index: 4, kind: output, shape index: {1}]
  %5 = xla_tuple %s3, %s4
  %s6 = sld [smem:[#allocation0]]
  $region61: #{tpu_custom_call.1} parent=0
    _
  %s8 = ssub.s32 1, %s6
  %s9 = scalar_select 0, %s8, %s6
  $region1: #{tpu_custom_call.1} parent=0
    #allocation2 [shape = 'u8[4096]{0}', space=vmem, size = 0x1000, scoped, tag = 'input window, operand 0']
    #allocation3 [shape = 's32[2]{0}', space=sflag, size = 0x8, scoped, tag = 'scoped memory for tpu_custom_call.1']
    #allocation4 [shape = 's32[2]{0}', space=sflag, size = 0x8, scoped, tag = 'scoped memory for tpu_custom_call.1']
    #allocation5 [shape = 'u8[8192]{0}', space=vmem, size = 0x2000, scoped, tag = 'input window, operand 1, single buffered']
    #allocation6 [shape = 's32[1]{0}', space=sflag, size = 0x4, scoped, tag = 'scoped memory for tpu_custom_call.1']
    #allocation7 [shape = 'u8[8192]{0}', space=vmem, size = 0x2000, scoped, tag = 'output window, operand 0']
    #allocation8 [shape = 'u8[4096]{0}', space=vmem, size = 0x1000, scoped, tag = 'output window, operand 1']
    #allocation9 [shape = 's32[2]{0}', space=sflag, size = 0x8, scoped, tag = 'scoped memory for tpu_custom_call.1']
    %10 = vsyncpa [#allocation3], 0
    %s11 = scalar_lea.sflag [#allocation3], 1
    %12 = vsyncpa %s11, 0
    %13 = vsyncpa [#allocation6], 0
    %14 = vsyncpa [#allocation4], 0
    %s15 = scalar_lea.sflag [#allocation4], 1
    %16 = vsyncpa %s15, 0
    %17 = vsyncpa [#allocation9], 0
    %s18 = scalar_lea.sflag [#allocation9], 1
    %19 = vsyncpa %s18, 0
    loop: start=0, step=1, limit=4
    $region2: #{tpu_custom_call.1} parent=1 // loop_pre_header
      _
    $region3: #{tpu_custom_call.1} parent=1 // loop_header
      %s21 = sphi 0, %s25
      %p22 = scmp.ge.s32.totalorder %s21, 4
      %s31 = sphi 0, %s33
      %s34 = sphi 0, %s31
      %s35 = sphi 0, %s34
      %s51 = sphi 0, %s35
      %s55 = sphi 0, %s55
      %s57 = sphi 0, %s55
      %s58 = sphi 0, %s57
      %s72 = sphi 0, %s58
      %s78 = sphi 0, %s80
      %s81 = sphi 0, %s78
      %s82 = sphi 0, %s81
      %s98 = sphi 0, %s82
      %s104 = sphi 0, %s106
      %s107 = sphi 0, %s104
      %s108 = sphi 0, %s107
      %s124 = sphi 0, %s108
      %s130 = sphi 0, %s132
      %s133 = sphi 0, %s130
      %s134 = sphi 0, %s133
      %s150 = sphi 0, %s134
    $region4: #{tpu_custom_call.1} parent=1 // loop_header_branch
      %24 = sbr.rel (%p22) target = $region8
    $region5: #{tpu_custom_call.1} parent=1 // loop_body
      %s26 = ssub.s32 %s21, 1
      %s27 = ssub.s32 %s21, 2
      %s28 = sadd.s32 %s21, 1
      %s29 = ssub.s32 %s21, %s28
      %p30 = scmp.eq.s32.totalorder %s29, 0
      %s32 = sadd.s32 %s31, 1
      %s33 = scalar_select %p30, %s31, %s32
      %p36 = pneg %p30
      %p37 = scmp.eq.s32.totalorder %s21, 1
      %p38 = por %p36, %p37
      %p39 = scmp.ne.s32.totalorder %s31, %s34
      %p40 = scmp.eq.s32.totalorder %s21, 0
      %p41 = por %p39, %p40
      %p42 = scmp.ne.s32.totalorder %s31, %s34
      %p43 = scmp.eq.s32.totalorder %s26, 1
      %p44 = por %p42, %p43
      %p45 = scmp.ne.s32.totalorder %s34, %s35
      %p46 = scmp.eq.s32.totalorder %s26, 0
      %p47 = por %p45, %p46
      %p48 = scmp.ne.s32.totalorder %s34, %s35
      %p49 = scmp.eq.s32.totalorder %s27, 1
      %p50 = por %p48, %p49
      %p52 = scmp.ne.s32.totalorder %s35, %s51
      %p53 = scmp.eq.s32.totalorder %s27, 0
      %p54 = por %p52, %p53
      %s56 = sadd.s32 %s55, 1
      %p59 = scmp.eq.s32.totalorder %s21, 1
      %p60 = scmp.ne.s32.totalorder %s55, %s57
      %p61 = scmp.eq.s32.totalorder %s21, 0
      %p62 = por %p60, %p61
      %p63 = scmp.ne.s32.totalorder %s55, %s57
      %p64 = scmp.eq.s32.totalorder %s26, 1
      %p65 = por %p63, %p64
      %p66 = scmp.ne.s32.totalorder %s57, %s58
      %p67 = scmp.eq.s32.totalorder %s26, 0
      %p68 = por %p66, %p67
      %p69 = scmp.ne.s32.totalorder %s57, %s58
      %p70 = scmp.eq.s32.totalorder %s27, 1
      %p71 = por %p69, %p70
      %p73 = scmp.ne.s32.totalorder %s58, %s72
      %p74 = scmp.eq.s32.totalorder %s27, 0
      %p75 = por %p73, %p74
      %s76 = ssub.s32 %s21, %s28
      %p77 = scmp.eq.s32.totalorder %s76, 0
      %s79 = sadd.s32 %s78, 1
      %s80 = scalar_select %p77, %s78, %s79
      %p83 = pneg %p77
      %p84 = scmp.eq.s32.totalorder %s21, 1
      %p85 = por %p83, %p84
      %p86 = scmp.ne.s32.totalorder %s78, %s81
      %p87 = scmp.eq.s32.totalorder %s21, 0
      %p88 = por %p86, %p87
      %p89 = scmp.ne.s32.totalorder %s78, %s81
      %p90 = scmp.eq.s32.totalorder %s26, 1
      %p91 = por %p89, %p90
      %p92 = scmp.ne.s32.totalorder %s81, %s82
      %p93 = scmp.eq.s32.totalorder %s26, 0
      %p94 = por %p92, %p93
      %p95 = scmp.ne.s32.totalorder %s81, %s82
      %p96 = scmp.eq.s32.totalorder %s27, 1
      %p97 = por %p95, %p96
      %p99 = scmp.ne.s32.totalorder %s82, %s98
      %p100 = scmp.eq.s32.totalorder %s27, 0
      %p101 = por %p99, %p100
      %s102 = ssub.s32 %s21, %s28
      %p103 = scmp.eq.s32.totalorder %s102, 0
      %s105 = sadd.s32 %s104, 1
      %s106 = scalar_select %p103, %s104, %s105
      %p109 = pneg %p103
      %p110 = scmp.eq.s32.totalorder %s21, 1
      %p111 = por %p109, %p110
      %p112 = scmp.ne.s32.totalorder %s104, %s107
      %p113 = scmp.eq.s32.totalorder %s21, 0
      %p114 = por %p112, %p113
      %p115 = scmp.ne.s32.totalorder %s104, %s107
      %p116 = scmp.eq.s32.totalorder %s26, 1
      %p117 = por %p115, %p116
      %p118 = scmp.ne.s32.totalorder %s107, %s108
      %p119 = scmp.eq.s32.totalorder %s26, 0
      %p120 = por %p118, %p119
      %p121 = scmp.ne.s32.totalorder %s107, %s108
      %p122 = scmp.eq.s32.totalorder %s27, 1
      %p123 = por %p121, %p122
      %p125 = scmp.ne.s32.totalorder %s108, %s124
      %p126 = scmp.eq.s32.totalorder %s27, 0
      %p127 = por %p125, %p126
      %s128 = ssub.s32 %s21, %s28
      %p129 = scmp.eq.s32.totalorder %s128, 0
      %s131 = sadd.s32 %s130, 1
      %s132 = scalar_select %p129, %s130, %s131
      %p135 = pneg %p129
      %p136 = scmp.eq.s32.totalorder %s21, 1
      %p137 = por %p135, %p136
      %p138 = scmp.ne.s32.totalorder %s130, %s133
      %p139 = scmp.eq.s32.totalorder %s21, 0
      %p140 = por %p138, %p139
      %p141 = scmp.ne.s32.totalorder %s130, %s133
      %p142 = scmp.eq.s32.totalorder %s26, 1
      %p143 = por %p141, %p142
      %p144 = scmp.ne.s32.totalorder %s133, %s134
      %p145 = scmp.eq.s32.totalorder %s26, 0
      %p146 = por %p144, %p145
      %p147 = scmp.ne.s32.totalorder %s133, %s134
      %p148 = scmp.eq.s32.totalorder %s27, 1
      %p149 = por %p147, %p148
      %p151 = scmp.ne.s32.totalorder %s134, %s150
      %p152 = scmp.eq.s32.totalorder %s27, 0
      %p153 = por %p151, %p152
      %p154 = scmp.le.s32.totalorder 1, %s21
      %p155 = scmp.lt.s32.totalorder %s21, 3
      %p156 = pnand %p154, %p155
      %p157 = pneg %p156
      // Predicated region
      $region9: #{tpu_custom_call.1} parent=5 // pred_check
        _
      $region10: #{tpu_custom_call.1} parent=5 // pred_check_branch
        %159 = sbr.rel (%p156) target = $region12
      $region11: #{tpu_custom_call.1} parent=5 // pred_region
        %s160 = ssub.s32 %s21, 1
        // Predicated region
        $region13: #{tpu_custom_call.1} parent=11 // pred_check
          %p161 = pneg %p68
        $region14: #{tpu_custom_call.1} parent=11 // pred_check_branch
          %163 = sbr.rel (%p161) target = $region16
        $region15: #{tpu_custom_call.1} parent=11 // pred_region
          %s165 = ssub.s32 256, 256
          %166 = vsyncadd [#allocation6], %s165
          %s167 = sshll.u32 [#allocation5], 4
          %s168 = int_to_ptr.vmem [resolvable:$true] %s167
          %173 = dma.hbm_to_vmem [thread:$0]  %s1, 256, %s168, [#allocation6], 64, 64, 4
        $region16: #{tpu_custom_call.1} parent=11 // pred_fallthru
          _
      $region12: #{tpu_custom_call.1} parent=5 // pred_fallthru
        _
      %p174 = scmp.lt.s32.totalorder %s21, 2
      // Predicated region
      $region17: #{tpu_custom_call.1} parent=5 // pred_check
        %p175 = pneg %p174
      $region18: #{tpu_custom_call.1} parent=5 // pred_check_branch
        %177 = sbr.rel (%p175) target = $region20
      $region19: #{tpu_custom_call.1} parent=5 // pred_region
        // Predicated region
        $region21: #{tpu_custom_call.1} parent=19 // pred_check
          %p178 = pneg %p41
        $region22: #{tpu_custom_call.1} parent=19 // pred_check_branch
          %180 = sbr.rel (%p178) target = $region24
        $region23: #{tpu_custom_call.1} parent=19 // pred_region
          %s181 = sand.u32 %s31, 1
          %s182 = scalar_lea.sflag [#allocation3], %s181
          %s183 = sand.u32 %s31, 1
          %s184 = smul.addr %s183, 4
          %s185 = scalar_lea.vmem [#allocation2], %s184
          %s187 = ssub.s32 64, 64
          %188 = vsyncadd %s182, %s187
          %s189 = smul.addr %s21, 64
          %s190 = scalar_lea.hbm %s0, %s189
          %s192 = sshll.u32 %s185, 4
          %s193 = int_to_ptr.vmem [resolvable:$true] %s192
          %195 = dma.hbm_to_vmem [thread:$0]  %s190, 64, %s193, %s182
        $region24: #{tpu_custom_call.1} parent=19 // pred_fallthru
          _
        // Predicated region
        $region25: #{tpu_custom_call.1} parent=19 // pred_check
          %p196 = pneg %p88
        $region26: #{tpu_custom_call.1} parent=19 // pred_check_branch
          %198 = sbr.rel (%p196) target = $region28
        $region27: #{tpu_custom_call.1} parent=19 // pred_region
          %p199 = scmp.lt.s32.totalorder %s21, 1
          %s200 = scalar_select %p199, %s21, 1
          %s201 = scalar_lea.vmem %s2, %s200
        $region28: #{tpu_custom_call.1} parent=19 // pred_fallthru
          _
      $region20: #{tpu_custom_call.1} parent=5 // pred_fallthru
        _
      %p202 = scmp.le.s32.totalorder 1, %s21
      %p203 = scmp.lt.s32.totalorder %s21, 3
      %p204 = pnand %p202, %p203
      %p205 = pneg %p204
      // Predicated region
      $region29: #{tpu_custom_call.1} parent=5 // pred_check
        _
      $region30: #{tpu_custom_call.1} parent=5 // pred_check_branch
        %207 = sbr.rel (%p204) target = $region32
      $region31: #{tpu_custom_call.1} parent=5 // pred_region
        %s208 = ssub.s32 %s21, 1
        %s209 = sand.u32 %s34, 1
        %s210 = scalar_lea.sflag [#allocation3], %s209
        %s211 = sand.u32 %s34, 1
        %s212 = smul.addr %s211, 4
        %s213 = scalar_lea.vmem [#allocation2], %s212
        // Predicated region
        $region33: #{tpu_custom_call.1} parent=31 // pred_check
          %p214 = pneg %p47
        $region34: #{tpu_custom_call.1} parent=31 // pred_check_branch
          %216 = sbr.rel (%p214) target = $region36
        $region35: #{tpu_custom_call.1} parent=31 // pred_region
          %217 = dma.done %s210, 64
        $region36: #{tpu_custom_call.1} parent=31 // pred_fallthru
          _
        // Predicated region
        $region37: #{tpu_custom_call.1} parent=31 // pred_check
          %p218 = pneg %p68
        $region38: #{tpu_custom_call.1} parent=31 // pred_check_branch
          %220 = sbr.rel (%p218) target = $region40
        $region39: #{tpu_custom_call.1} parent=31 // pred_region
          %221 = dma.done [#allocation6], 256
        $region40: #{tpu_custom_call.1} parent=31 // pred_fallthru
          _
        %s222 = sand.u32 %s34, 1
        %s223 = scalar_lea.sflag [#allocation3], %s222
        %s224 = sand.u32 %s34, 1
        %s225 = smul.addr %s224, 4
        %s226 = scalar_lea.vmem [#allocation2], %s225
        %p227 = pneg %p47
        %p228 = pneg %p44
        %p229 = pneg %p68
        %p230 = pneg %p65
        %p231 = scmp.lt.s32.totalorder %s26, 1
        %s232 = scalar_select %p231, %s26, 1
        %s233 = scalar_lea.vmem %s2, %s232
        %p234 = pneg %p94
        %p235 = pneg %p91
        %p236 = pneg %p120
        %p237 = pneg %p117
        %s238 = sand.u32 %s107, 1
        %s239 = scalar_lea.sflag [#allocation4], %s238
        %s240 = sand.u32 %s107, 1
        %s241 = smul.addr %s240, 8
        %s242 = scalar_lea.vmem [#allocation7], %s241
        %p243 = pneg %p146
        %p244 = pneg %p143
        %s245 = sand.u32 %s133, 1
        %s246 = scalar_lea.sflag [#allocation9], %s245
        %s247 = sand.u32 %s133, 1
        %s248 = smul.addr %s247, 4
        %s249 = scalar_lea.vmem [#allocation8], %s248
        %p250 = scmp.lt.s32.totalorder %s26, 1
        %s251 = scalar_select %p250, %s26, 1
        %s252 = scalar_lea.vmem %s2, %s251
        %v254 = vld [vmem:[%s213] sm:$0xf]
        %v255 = vld [vmem:[#allocation5] sm:$0xf]
        %v256 = vld [vmem:[#allocation5 + $0x4] sm:$0xf]
        %v257 = vld [vmem:[#allocation5 + $0x8] sm:$0xf]
        %v258 = vld [vmem:[#allocation5 + $0xc] sm:$0xf]
        %v263 = vunpack.c.l.b16 %v255
        %v264 = vunpack.c.l.b16 %v256
        %v265 = vunpack.c.l.b16 %v257
        %v266 = vunpack.c.l.b16 %v258
        %v267 = vpack.c.b16 %v264, %v263
        %v268 = vpack.c.b16 %v266, %v265
        %vm271 = vcmask 261120
        %v273 = vsel %vm271, %v254, 0
        %275 = vmatprep.subr.bf16.mxu0 0
        %276 = vmatpush1.bf16.msra.mxu0 %v267
        %277 = vmatprep.subr.bf16.mxu0 0
        %278 = vmatpush1.bf16.msra.mxu0 %v268
        %279 = vmatprep.subr.bf16.mxu0 0
        %280 = vmatpush1.bf16.msra.mxu0 0
        %281 = vmatprep.subr.bf16.mxu0 0
        %282 = vmatpush1.bf16.msra.mxu0 0
        %283 = vmatprep.subr.bf16.mxu0 0
        %284 = vmatpush1.bf16.msra.mxu0 0
        %285 = vmatprep.subr.bf16.mxu0 0
        %286 = vmatpush1.bf16.msra.mxu0 0
        %287 = vmatprep.subr.bf16.mxu0 0
        %288 = vmatpush1.bf16.msra.mxu0 0
        %289 = vmatprep.subr.bf16.mxu0 0
        %290 = vmatpush1.bf16.msra.mxu0 0
        %291 = vmatprep.subr.bf16.mxu0 0
        %292 = vmatpush1.bf16.msra.mxu0 0
        %293 = vmatprep.subr.bf16.mxu0 0
        %294 = vmatpush1.bf16.msra.mxu0 0
        %295 = vmatprep.subr.bf16.mxu0 0
        %296 = vmatpush1.bf16.msra.mxu0 0
        %297 = vmatprep.subr.bf16.mxu0 0
        %298 = vmatpush1.bf16.msra.mxu0 0
        %299 = vmatprep.subr.bf16.mxu0 0
        %300 = vmatpush1.bf16.msra.mxu0 0
        %301 = vmatprep.subr.bf16.mxu0 0
        %302 = vmatpush1.bf16.msra.mxu0 0
        %303 = vmatprep.subr.bf16.mxu0 0
        %304 = vmatpush1.bf16.msra.mxu0 0
        %305 = vmatprep.subr.bf16.mxu0 0
        %306 = vmatpush1.bf16.msra.mxu0 0
        %307 = vmatprep.mubr.bf16.mxu0 0
        %308 = vmatmul.mubr.bf16.gmra.mrb[0].mxu0 %v273
        %v309 = vpop.f32.mrb[0].mxu0
        %v310 = vadd.f32 0.0, %v309
        %v311 = vpop.f32.mrb[0].mxu0
        %v312 = vpop.f32.mrb[0].mxu0
        %v313 = vpop.f32.mrb[0].mxu0
        %314 = vdwg.mxu0
        %v315 = vpack.c.bf16 %v310, %v310
        %v316 = vld [vmem:[%s252] sm:$0x1]
        %v317 = vunpack.c.l.bf16 %v316
        %v318 = vlaneseq
        %v319 = vshrl.u32 %v318, 7
        %v320 = vsub.s32 0, %v319
        %v321 = vrot.slane %v317, %v320
        %323 = vrot.lane.b32.xlu0 %v315, 96
        %v324 = vpop.permute.xlu0 %323
        %v326 = vsel %vm271, %v324, 0
        %v329 = vsel %vm271, %v315, 0
        %331 = vmatprep.subr.bf16.mxu0 0
        %332 = vmatpush1.bf16.xpose.msra.mxu0 %v329
        %333 = vmatprep.subr.bf16.mxu0 0
        %334 = vmatpush1.bf16.xpose.msra.mxu0 0
        %335 = vmatprep.subr.bf16.mxu0 0
        %336 = vmatpush1.bf16.xpose.msra.mxu0 0
        %337 = vmatprep.subr.bf16.mxu0 0
        %338 = vmatpush1.bf16.xpose.msra.mxu0 0
        %339 = vmatprep.subr.bf16.mxu0 0
        %340 = vmatpush1.bf16.xpose.msra.mxu0 0
        %341 = vmatprep.subr.bf16.mxu0 0
        %342 = vmatpush1.bf16.xpose.msra.mxu0 0
        %343 = vmatprep.subr.bf16.mxu0 0
        %344 = vmatpush1.bf16.xpose.msra.mxu0 0
        %345 = vmatprep.subr.bf16.mxu0 0
        %346 = vmatpush1.bf16.xpose.msra.mxu0 0
        %347 = vmatprep.subr.bf16.mxu0 0
        %348 = vmatpush1.bf16.xpose.msra.mxu0 0
        %349 = vmatprep.subr.bf16.mxu0 0
        %350 = vmatpush1.bf16.xpose.msra.mxu0 0
        %351 = vmatprep.subr.bf16.mxu0 0
        %352 = vmatpush1.bf16.xpose.msra.mxu0 0
        %353 = vmatprep.subr.bf16.mxu0 0
        %354 = vmatpush1.bf16.xpose.msra.mxu0 0
        %355 = vmatprep.subr.bf16.mxu0 0
        %356 = vmatpush1.bf16.xpose.msra.mxu0 0
        %357 = vmatprep.subr.bf16.mxu0 0
        %358 = vmatpush1.bf16.xpose.msra.mxu0 0
        %359 = vmatprep.subr.bf16.mxu0 0
        %360 = vmatpush1.bf16.xpose.msra.mxu0 0
        %361 = vmatprep.subr.bf16.mxu0 0
        %362 = vmatpush1.bf16.xpose.msra.mxu0 0
        %363 = vmatprep.mubr.bf16.mxu0 0
        %364 = vmatmul.mubr.bf16.gmra.mrb[0].mxu0 %v326
        %v365 = vpop.f32.mrb[0].mxu0
        %v366 = vadd.f32 %v321, %v365
        %v367 = vpop.f32.mrb[0].mxu0
        %v368 = vpop.f32.mrb[0].mxu0
        %v369 = vpop.f32.mrb[0].mxu0
        %370 = vdwg.mxu0
        %vm371 = vcmask 64512
        %v372 = vsel %vm371, %v366, -inf
        %373 = vmax.xlane.f32.xlu0 %v372
        %v374 = vpop.xlane.xlu0 %373
        %v375 = vsub.f32 %v366, %v374
        %v376 = vmul.f32 %v375, 1.442695
        %v377 = vpow.pop %v376
        %v378 = vsel %vm371, %v377, 0.0
        %379 = vadd.xlane.f32.xlu0 %v378
        %v380 = vpop.xlane.xlu0 %379
        %v381 = vrcp.pop %v380
        %v382 = vmul.f32 1.0, %v381
        %v383 = vmul.f32 %v377, %v382
        %v384 = vpack.c.bf16 %v383, %v383
        %385 = vrot.lane.b32.xlu0 %v315, 64
        %v386 = vpop.permute.xlu0 %385
        %v388 = vsel %vm371, %v384, 0
        %vm390 = vcmask 1043456
        %v392 = vsel %vm390, %v386, 0
        %394 = vmatprep.subr.bf16.mxu0 0
        %395 = vmatpush1.bf16.msra.mxu0 %v392
        %396 = vmatprep.subr.bf16.mxu0 0
        %397 = vmatpush1.bf16.msra.mxu0 0
        %398 = vmatprep.subr.bf16.mxu0 0
        %399 = vmatpush1.bf16.msra.mxu0 0
        %400 = vmatprep.subr.bf16.mxu0 0
        %401 = vmatpush1.bf16.msra.mxu0 0
        %402 = vmatprep.subr.bf16.mxu0 0
        %403 = vmatpush1.bf16.msra.mxu0 0
        %404 = vmatprep.subr.bf16.mxu0 0
        %405 = vmatpush1.bf16.msra.mxu0 0
        %406 = vmatprep.subr.bf16.mxu0 0
        %407 = vmatpush1.bf16.msra.mxu0 0
        %408 = vmatprep.subr.bf16.mxu0 0
        %409 = vmatpush1.bf16.msra.mxu0 0
        %410 = vmatprep.subr.bf16.mxu0 0
        %411 = vmatpush1.bf16.msra.mxu0 0
        %412 = vmatprep.subr.bf16.mxu0 0
        %413 = vmatpush1.bf16.msra.mxu0 0
        %414 = vmatprep.subr.bf16.mxu0 0
        %415 = vmatpush1.bf16.msra.mxu0 0
        %416 = vmatprep.subr.bf16.mxu0 0
        %417 = vmatpush1.bf16.msra.mxu0 0
        %418 = vmatprep.subr.bf16.mxu0 0
        %419 = vmatpush1.bf16.msra.mxu0 0
        %420 = vmatprep.subr.bf16.mxu0 0
        %421 = vmatpush1.bf16.msra.mxu0 0
        %422 = vmatprep.subr.bf16.mxu0 0
        %423 = vmatpush1.bf16.msra.mxu0 0
        %424 = vmatprep.subr.bf16.mxu0 0
        %425 = vmatpush1.bf16.msra.mxu0 0
        %426 = vmatprep.mubr.bf16.mxu0 0
        %427 = vmatmul.mubr.bf16.gmra.mrb[0].mxu0 %v388
        %v428 = vpop.f32.mrb[0].mxu0
        %v429 = vadd.f32 0.0, %v428
        %v430 = vpop.f32.mrb[0].mxu0
        %v431 = vpop.f32.mrb[0].mxu0
        %v432 = vpop.f32.mrb[0].mxu0
        %433 = vdwg.mxu0
        %vm434 = vcmask 60416
        %435 = vst.msk [vmem:[%s249] sm:$0xf] %vm434, %v384
        %436 = vst.msk [vmem:[%s242] sm:$0xff] %vm271, %v429
        %s437 = sand.u32 %s107, 1
        %s438 = scalar_lea.sflag [#allocation4], %s437
        %s439 = sand.u32 %s107, 1
        %s440 = smul.addr %s439, 8
        %s441 = scalar_lea.vmem [#allocation7], %s440
        %s442 = sand.u32 %s133, 1
        %s443 = scalar_lea.sflag [#allocation9], %s442
        %s444 = sand.u32 %s133, 1
        %s445 = smul.addr %s444, 4
        %s446 = scalar_lea.vmem [#allocation8], %s445
        // Predicated region
        $region41: #{tpu_custom_call.1} parent=31 // pred_check
          %p447 = pneg %p117
        $region42: #{tpu_custom_call.1} parent=31 // pred_check_branch
          %449 = sbr.rel (%p447) target = $region44
        $region43: #{tpu_custom_call.1} parent=31 // pred_region
          %s451 = ssub.s32 128, 128
          %452 = vsyncadd %s438, %s451
          %s453 = smul.addr %s26, 128
          %s454 = scalar_lea.hbm %s3, %s453
          %s456 = sshll.u32 %s441, 4
          %s457 = int_to_ptr.vmem [resolvable:$true] %s456
          %459 = dma.vmem_to_hbm [thread:$0]  %s457, 128, %s454, %s438
        $region44: #{tpu_custom_call.1} parent=31 // pred_fallthru
          _
        // Predicated region
        $region45: #{tpu_custom_call.1} parent=31 // pred_check
          %p460 = pneg %p143
        $region46: #{tpu_custom_call.1} parent=31 // pred_check_branch
          %462 = sbr.rel (%p460) target = $region48
        $region47: #{tpu_custom_call.1} parent=31 // pred_region
          %s464 = ssub.s32 64, 64
          %465 = vsyncadd %s443, %s464
          %s466 = smul.addr %s26, 64
          %s467 = scalar_lea.hbm %s4, %s466
          %s469 = sshll.u32 %s446, 4
          %s470 = int_to_ptr.vmem [resolvable:$true] %s469
          %472 = dma.vmem_to_hbm [thread:$0]  %s470, 64, %s467, %s443
        $region48: #{tpu_custom_call.1} parent=31 // pred_fallthru
          _
      $region32: #{tpu_custom_call.1} parent=5 // pred_fallthru
        _
      %p473 = scmp.le.s32.totalorder 2, %s21
      // Predicated region
      $region49: #{tpu_custom_call.1} parent=5 // pred_check
        %p474 = pneg %p473
      $region50: #{tpu_custom_call.1} parent=5 // pred_check_branch
        %476 = sbr.rel (%p474) target = $region52
      $region51: #{tpu_custom_call.1} parent=5 // pred_region
        %s477 = ssub.s32 %s21, 2
        // Predicated region
        $region53: #{tpu_custom_call.1} parent=51 // pred_check
          %p478 = pneg %p123
        $region54: #{tpu_custom_call.1} parent=51 // pred_check_branch
          %480 = sbr.rel (%p478) target = $region56
        $region55: #{tpu_custom_call.1} parent=51 // pred_region
          %s481 = sand.u32 %s108, 1
          %s482 = scalar_lea.sflag [#allocation4], %s481
          %s483 = sand.u32 %s108, 1
          %s484 = smul.addr %s483, 8
          %s485 = scalar_lea.vmem [#allocation7], %s484
          %486 = dma.done %s482, 128
        $region56: #{tpu_custom_call.1} parent=51 // pred_fallthru
          _
        // Predicated region
        $region57: #{tpu_custom_call.1} parent=51 // pred_check
          %p487 = pneg %p149
        $region58: #{tpu_custom_call.1} parent=51 // pred_check_branch
          %489 = sbr.rel (%p487) target = $region60
        $region59: #{tpu_custom_call.1} parent=51 // pred_region
          %s490 = sand.u32 %s134, 1
          %s491 = scalar_lea.sflag [#allocation9], %s490
          %s492 = sand.u32 %s134, 1
          %s493 = smul.addr %s492, 4
          %s494 = scalar_lea.vmem [#allocation8], %s493
          %495 = dma.done %s491, 64
        $region60: #{tpu_custom_call.1} parent=51 // pred_fallthru
          _
      $region52: #{tpu_custom_call.1} parent=5 // pred_fallthru
        _
    $region6: #{tpu_custom_call.1} parent=1 // loop_footer
      %s25 = sadd.s32 1, %s21
    $region7: #{tpu_custom_call.1} parent=1 // loop_footer_branch
      %20 = sbr.rel target = $region3
    $region8: #{tpu_custom_call.1} parent=1 // loop_exit
      _
    %496 = vsyncpa [#allocation3], 1
    %s497 = scalar_lea.sflag [#allocation3], 1
    %498 = vsyncpa %s497, 1
    %499 = vsyncpa [#allocation6], 1
    %500 = vsyncpa [#allocation4], 1
    %s501 = scalar_lea.sflag [#allocation4], 1
    %502 = vsyncpa %s501, 1
    %503 = vsyncpa [#allocation9], 1
    %s504 = scalar_lea.sflag [#allocation9], 1
    %505 = vsyncpa %s504, 1

</llo_original>
